<compile_context>
chip_gen: v6e
topology: v6e:2x2x1
jax: 0.10.0
libtpu: 0.0.40
codegen_flags: <defaults>
</compile_context>

<pallas_src>
import jax
import jax.numpy as jnp
from jax.experimental import pallas as pl
from jax.experimental.pallas import tpu as pltpu

NUM_RELATIONS = 3
CLF_PAD = 128          # lane-padded label_clf output width (real width = 2)
DEFAULT_TM = 512       # row-tile size; sweep 256-1024 on production shapes


def _round_up(x, m):
    return (x + m - 1) // m * m


# ----------------------------- Pallas kernel --------------------------------

def _fused_interagg_kernel(thr_ref, self_ref, neigh_ref, w_ref,
                           clf_w_ref, clf_b_ref, out_ref, scores_ref):
    """One row-tile of CARE-GNN 'GNN' inter-aggregation + fused label_clf.

    thr_ref    : SMEM (3,) f32        filtering thresholds (scalar-prefetched)
    self_ref   : VMEM (TM, F) f32     batch node features
    neigh_ref  : VMEM (3, TM, F) f32  neighbor features per relation
    w_ref      : VMEM (F, E_pad) bf16 shared projection weight (zero-padded cols)
    clf_w_ref  : VMEM (F, 128) f32    label_clf weight, lane-padded
    clf_b_ref  : VMEM (1, 128) f32    label_clf bias, lane-padded
    out_ref    : VMEM (TM, E_pad) f32 relu((self + Σ_r thr_r*neigh_r) @ W)
    scores_ref : VMEM (TM, 128) f32   self @ W_clf + b_clf (cols >= 2 are zero)
    """
    # Read SMEM scalars before any vector work (keeps sst->sld forwarding clean
    # if DMA waits appear in later variants).
    t0 = thr_ref[0]
    t1 = thr_ref[1]
    t2 = thr_ref[2]

    x = self_ref[...]                                          # (TM, F) f32

    # Linearity fusion: cheap f32 VPU weighted sum, then a single MXU pass.
    fused = x + t0 * neigh_ref[0] + t1 * neigh_ref[1] + t2 * neigh_ref[2]

    h = jnp.dot(fused.astype(jnp.bfloat16), w_ref[...],
                preferred_element_type=jnp.float32)
    out_ref[...] = jnp.maximum(h, 0.0)

    # Fused label-aware classifier (tiny; kept f32, lane-padded to 128 so the
    # store is a full-width unmasked vst).
    scores_ref[...] = (
        jnp.dot(x, clf_w_ref[...], preferred_element_type=jnp.float32)
        + clf_b_ref[...]
    )


def care_gnn_inter_agg(self_feats, neigh_feats, weight, clf_w, clf_b,
                       thresholds, *, tm=DEFAULT_TM):
    """relu((self + Σ thr_r * neigh_r) @ W) and (self @ W_clf + b_clf)."""
    n, F = self_feats.shape
    E = weight.shape[1]
    E_pad = _round_up(E, 128)

    tm = min(tm, _round_up(n, 8))
    n_pad = _round_up(n, tm)

    if n_pad != n:
        pad = n_pad - n
        self_feats = jnp.pad(self_feats, ((0, pad), (0, 0)))
        neigh_feats = jnp.pad(neigh_feats, ((0, 0), (0, pad), (0, 0)))

    w_pad = weight if E_pad == E else jnp.pad(weight, ((0, 0), (0, E_pad - E)))
    w_bf16 = w_pad.astype(jnp.bfloat16)          # halves HBM/VMEM weight traffic
    clf_w_pad = jnp.pad(clf_w, ((0, 0), (0, CLF_PAD - clf_w.shape[1])))
    clf_b_pad = jnp.pad(clf_b, (0, CLF_PAD - clf_b.shape[0])).reshape(1, CLF_PAD)

    grid = (n_pad // tm,)

    flops = (2 * n_pad * F * (E_pad + CLF_PAD)        # two MXU matmuls
             + 7 * n_pad * F                          # weighted neighbor sum
             + n_pad * (E_pad + CLF_PAD))             # relu + bias add
    bytes_accessed = (4 * n_pad * F                   # self
                      + 4 * NUM_RELATIONS * n_pad * F # neigh
                      + 2 * F * E_pad                 # bf16 weight
                      + 4 * F * CLF_PAD + 4 * CLF_PAD # clf params
                      + 4 * n_pad * (E_pad + CLF_PAD))  # outputs

    combined_pad, scores_pad = pl.pallas_call(
        _fused_interagg_kernel,
        out_shape=(jax.ShapeDtypeStruct((n_pad, E_pad), jnp.float32),
                   jax.ShapeDtypeStruct((n_pad, CLF_PAD), jnp.float32)),
        grid_spec=pltpu.PrefetchScalarGridSpec(
            num_scalar_prefetch=1,                    # thresholds -> SMEM
            grid=grid,
            in_specs=[
                pl.BlockSpec((tm, F), lambda i, thr: (i, 0)),
                pl.BlockSpec((NUM_RELATIONS, tm, F), lambda i, thr: (0, i, 0)),
                pl.BlockSpec((F, E_pad), lambda i, thr: (0, 0)),    # VMEM-resident
                pl.BlockSpec((F, CLF_PAD), lambda i, thr: (0, 0)),
                pl.BlockSpec((1, CLF_PAD), lambda i, thr: (0, 0)),
            ],
            out_specs=[
                pl.BlockSpec((tm, E_pad), lambda i, thr: (i, 0)),
                pl.BlockSpec((tm, CLF_PAD), lambda i, thr: (i, 0)),
            ],
        ),
        compiler_params=pltpu.CompilerParams(
            dimension_semantics=("parallel",),        # shard row tiles over TCs
            vmem_limit_bytes=48 * 1024 * 1024,        # safe on v5e/v6e/v7x (<64MiB)
        ),
        cost_estimate=pl.CostEstimate(
            flops=flops, transcendentals=0, bytes_accessed=bytes_accessed),
    )(thresholds, self_feats, neigh_feats, w_bf16, clf_w_pad, clf_b_pad)

    return combined_pad[:n, :E], scores_pad[:n, :2]


# ------------------------------ module wrapper -------------------------------

def xavier_uniform(key, shape):
    fan_in, fan_out = shape[0], shape[1]
    bound = (6.0 / (fan_in + fan_out)) ** 0.5
    return jax.random.uniform(key, shape, jnp.float32, -bound, bound)


class InterAggPallas:
    """Inter-relation aggregator (inter='GNN' path) with a fused Pallas hot path."""

    def __init__(self, features, feat_dim, embed_dim, adj_norm, key):
        self.features = features              # (num_nodes, feat_dim)
        self.feat_dim = feat_dim
        self.embed_dim = embed_dim
        self.adj_norm = adj_norm              # (3, num_nodes, num_nodes) row-normalized
        self.thresholds = jnp.array([0.5, 0.5, 0.5], jnp.float32)

        k1, k2, k3, k4, k5 = jax.random.split(key, 5)
        self.weight = xavier_uniform(k1, (feat_dim, embed_dim))      # nn.Parameter
        self.alpha = xavier_uniform(k2, (embed_dim, 3))              # unused for 'GNN'
        self.a = xavier_uniform(k3, (2 * embed_dim, 1))              # unused for 'GNN'
        self.clf_w = xavier_uniform(k4, (feat_dim, 2))               # label_clf weight
        self.clf_b = jax.random.uniform(k5, (2,), jnp.float32, -0.1, 0.1)

    def forward(self, nodes, labels=None, train_flag=True):
        # TODO(synk): the intra-relation aggregators (ragged neighbor lookup,
        # label-aware distance sorting, RL-driven top-p filtering) operate on
        # Python set/list structures with data-dependent sizes; approximated
        # here with a dense row-normalized neighbor-mean per relation.
        neigh_feats = jnp.stack(
            [self.adj_norm[r][nodes] @ self.features for r in range(NUM_RELATIONS)],
            axis=0,
        )                                                            # (3, n, F)
        self_feats = self.features[nodes]                            # (n, F)

        # Fused Pallas kernel: threshold_inter_agg (Eq. 9) + label_clf on the
        # batch rows only (classifying the whole table was pure waste).
        combined, center_scores = care_gnn_inter_agg(
            self_feats, neigh_feats, self.weight, self.clf_w, self.clf_b,
            self.thresholds,
        )

        # TODO(synk): RLModule threshold update uses Python-list epoch logs; skipped.
        return combined, center_scores


# ---------------------------------- main --------------------------------------

if __name__ == "__main__":
    key = jax.random.PRNGKey(0)
    k_feat, k_adj, k_mod = jax.random.split(key, 3)

    num_nodes, feat_dim, embed_dim, n = 40, 32, 64, 8

    features = jax.random.normal(k_feat, (num_nodes, feat_dim), jnp.float32)

    # synthetic multi-relation graph: 3 binary adjacency matrices, row-normalized
    adj_keys = jax.random.split(k_adj, NUM_RELATIONS)
    adjs = []
    for r in range(NUM_RELATIONS):
        a = (jax.random.uniform(adj_keys[r], (num_nodes, num_nodes)) < 0.2).astype(
            jnp.float32
        )
        a = a + jnp.eye(num_nodes, dtype=jnp.float32)  # ensure non-empty neighbor sets
        a = a / jnp.sum(a, axis=1, keepdims=True)
        adjs.append(a)
    adj_norm = jnp.stack(adjs, axis=0)

    model = InterAggPallas(features, feat_dim, embed_dim, adj_norm, k_mod)

    nodes = jnp.arange(n, dtype=jnp.int32)
    labels = jnp.zeros((n,), jnp.int32)

    combined, center_scores = model.forward(nodes, labels, train_flag=True)
    combined = jax.block_until_ready(combined)
    center_scores = jax.block_until_ready(center_scores)

    # ---- reference checks -----------------------------------------------------
    self_f = features[nodes]
    neigh_f = jnp.stack([adj_norm[r][nodes] @ features for r in range(3)], axis=0)
    fused = self_f + sum(model.thresholds[r] * neigh_f[r] for r in range(3))

    # bf16-matched reference (same casting as the kernel's MXU path)
    ref_bf16 = jnp.maximum(
        jnp.dot(fused.astype(jnp.bfloat16), model.weight.astype(jnp.bfloat16),
                preferred_element_type=jnp.float32),
        0.0,
    )
    # exact f32 reference (loose sanity bound: bf16 input rounding only)
    ref_f32 = jnp.maximum(fused @ model.weight, 0.0)
    ref_scores = self_f @ model.clf_w + model.clf_b

    assert combined.shape == (n, embed_dim) and center_scores.shape == (n, 2)
    assert jnp.allclose(combined, ref_bf16, atol=2e-3, rtol=2e-3)
    assert jnp.allclose(combined, ref_f32, atol=1e-1, rtol=5e-2)
    assert jnp.allclose(center_scores, ref_scores, atol=1e-3, rtol=1e-3)

    print("KERNEL_OK")
</pallas_src>

<mosaic_0001>
module attributes {stable_mosaic.version = 11 : i64} {
  func.func @_fused_interagg_kernel(%arg0: i32, %arg1: memref<3xf32, #tpu.memory_space<smem>>, %arg2: memref<8x32xf32, #tpu.memory_space<vmem>>, %arg3: memref<3x8x32xf32, #tpu.memory_space<vmem>>, %arg4: memref<32x128xbf16, #tpu.memory_space<vmem>>, %arg5: memref<32x128xf32, #tpu.memory_space<vmem>>, %arg6: memref<1x128xf32, #tpu.memory_space<vmem>>, %arg7: memref<8x128xf32, #tpu.memory_space<vmem>>, %arg8: memref<8x128xf32, #tpu.memory_space<vmem>>) attributes {dimension_semantics = [#tpu.dimension_semantics<parallel>], iteration_bounds = array<i64: 1>, scalar_prefetch = 1 : i64, scratch_operands = 0 : i64, tpu.core_type = #tpu.core_type<tc>, window_params = [{transform_indices = @transform_0, window_bounds = array<i64: 8, 32>}, {transform_indices = @transform_1, window_bounds = array<i64: 3, 8, 32>}, {pipeline_mode = #tpu.pipeline_mode<synchronous>, transform_indices = @transform_2, window_bounds = array<i64: 32, 128>}, {pipeline_mode = #tpu.pipeline_mode<synchronous>, transform_indices = @transform_3, window_bounds = array<i64: 32, 128>}, {pipeline_mode = #tpu.pipeline_mode<synchronous>, transform_indices = @transform_4, window_bounds = array<i64: 1, 128>}, {transform_indices = @transform_5, window_bounds = array<i64: 8, 128>}, {transform_indices = @transform_6, window_bounds = array<i64: 8, 128>}]} {
    %c0 = arith.constant 0 : index
    %0 = memref.load %arg1[%c0] : memref<3xf32, #tpu.memory_space<smem>>
    %c1 = arith.constant 1 : index
    %1 = memref.load %arg1[%c1] : memref<3xf32, #tpu.memory_space<smem>>
    %c2 = arith.constant 2 : index
    %2 = memref.load %arg1[%c2] : memref<3xf32, #tpu.memory_space<smem>>
    %c0_0 = arith.constant 0 : index
    %c0_1 = arith.constant 0 : index
    %3 = vector.load %arg2[%c0_0, %c0_1] : memref<8x32xf32, #tpu.memory_space<vmem>>, vector<8x32xf32>
    %c0_2 = arith.constant 0 : index
    %c0_3 = arith.constant 0 : index
    %c0_4 = arith.constant 0 : index
    %4 = vector.load %arg3[%c0_2, %c0_3, %c0_4] : memref<3x8x32xf32, #tpu.memory_space<vmem>>, vector<1x8x32xf32>
    %5 = vector.shape_cast %4 : vector<1x8x32xf32> to vector<8x32xf32>
    %6 = vector.broadcast %0 : f32 to vector<8x32xf32>
    %7 = arith.mulf %6, %5 : vector<8x32xf32>
    %8 = arith.addf %3, %7 : vector<8x32xf32>
    %c1_5 = arith.constant 1 : index
    %c0_6 = arith.constant 0 : index
    %c0_7 = arith.constant 0 : index
    %9 = vector.load %arg3[%c1_5, %c0_6, %c0_7] : memref<3x8x32xf32, #tpu.memory_space<vmem>>, vector<1x8x32xf32>
    %10 = vector.shape_cast %9 : vector<1x8x32xf32> to vector<8x32xf32>
    %11 = vector.broadcast %1 : f32 to vector<8x32xf32>
    %12 = arith.mulf %11, %10 : vector<8x32xf32>
    %13 = arith.addf %8, %12 : vector<8x32xf32>
    %c2_8 = arith.constant 2 : index
    %c0_9 = arith.constant 0 : index
    %c0_10 = arith.constant 0 : index
    %14 = vector.load %arg3[%c2_8, %c0_9, %c0_10] : memref<3x8x32xf32, #tpu.memory_space<vmem>>, vector<1x8x32xf32>
    %15 = vector.shape_cast %14 : vector<1x8x32xf32> to vector<8x32xf32>
    %16 = vector.broadcast %2 : f32 to vector<8x32xf32>
    %17 = arith.mulf %16, %15 : vector<8x32xf32>
    %18 = arith.addf %13, %17 : vector<8x32xf32>
    %19 = arith.truncf %18 : vector<8x32xf32> to vector<8x32xbf16>
    %c0_11 = arith.constant 0 : index
    %c0_12 = arith.constant 0 : index
    %20 = vector.load %arg4[%c0_11, %c0_12] : memref<32x128xbf16, #tpu.memory_space<vmem>>, vector<32x128xbf16>
    %cst = arith.constant dense<0.000000e+00> : vector<8x128xf32>
    %21 = tpu.matmul %19, %20, %cst {dimension_numbers = #tpu.dot_dimension_numbers<[1], [0], [0], [1], [0, 0, 1, 1], [], []>} : vector<8x32xbf16>, vector<32x128xbf16>, vector<8x128xf32> -> vector<8x128xf32>
    %cst_13 = arith.constant 0.000000e+00 : f32
    %22 = vector.broadcast %cst_13 : f32 to vector<8x128xf32>
    %23 = arith.maximumf %21, %22 : vector<8x128xf32>
    %c0_14 = arith.constant 0 : index
    %c0_15 = arith.constant 0 : index
    %24 = vector.load %arg7[%c0_14, %c0_15] : memref<8x128xf32, #tpu.memory_space<vmem>>, vector<8x128xf32>
    tpu.vector_store %arg7[%c0_14, %c0_15], %23 {strides = array<i32>} : memref<8x128xf32, #tpu.memory_space<vmem>>, vector<8x128xf32>,
    %c0_16 = arith.constant 0 : index
    %c0_17 = arith.constant 0 : index
    %25 = vector.load %arg5[%c0_16, %c0_17] : memref<32x128xf32, #tpu.memory_space<vmem>>, vector<32x128xf32>
    %cst_18 = arith.constant dense<0.000000e+00> : vector<8x128xf32>
    %26 = tpu.matmul %3, %25, %cst_18 {dimension_numbers = #tpu.dot_dimension_numbers<[1], [0], [0], [1], [0, 0, 1, 1], [], []>} : vector<8x32xf32>, vector<32x128xf32>, vector<8x128xf32> -> vector<8x128xf32>
    %c0_19 = arith.constant 0 : index
    %c0_20 = arith.constant 0 : index
    %27 = vector.load %arg6[%c0_19, %c0_20] : memref<1x128xf32, #tpu.memory_space<vmem>>, vector<1x128xf32>
    %28 = vector.broadcast %27 : vector<1x128xf32> to vector<8x128xf32>
    %29 = arith.addf %26, %28 : vector<8x128xf32>
    %c0_21 = arith.constant 0 : index
    %c0_22 = arith.constant 0 : index
    %30 = vector.load %arg8[%c0_21, %c0_22] : memref<8x128xf32, #tpu.memory_space<vmem>>, vector<8x128xf32>
    tpu.vector_store %arg8[%c0_21, %c0_22], %29 {strides = array<i32>} : memref<8x128xf32, #tpu.memory_space<vmem>>, vector<8x128xf32>,
    return
  }
  func.func @transform_0(%arg0: i32, %arg1: memref<3xf32, #tpu.memory_space<smem>>) -> (i32, i32) {
    %c0_i32 = arith.constant 0 : i32
    %c0_i32_0 = arith.constant 0 : i32
    return %arg0, %c0_i32 : i32, i32
  }
  func.func @transform_1(%arg0: i32, %arg1: memref<3xf32, #tpu.memory_space<smem>>) -> (i32, i32, i32) {
    %c0_i32 = arith.constant 0 : i32
    %c0_i32_0 = arith.constant 0 : i32
    %c0_i32_1 = arith.constant 0 : i32
    return %c0_i32, %arg0, %c0_i32_0 : i32, i32, i32
  }
  func.func @transform_2(%arg0: i32, %arg1: memref<3xf32, #tpu.memory_space<smem>>) -> (i32, i32) {
    %c0_i32 = arith.constant 0 : i32
    %c0_i32_0 = arith.constant 0 : i32
    %c0_i32_1 = arith.constant 0 : i32
    return %c0_i32, %c0_i32_0 : i32, i32
  }
  func.func @transform_3(%arg0: i32, %arg1: memref<3xf32, #tpu.memory_space<smem>>) -> (i32, i32) {
    %c0_i32 = arith.constant 0 : i32
    %c0_i32_0 = arith.constant 0 : i32
    %c0_i32_1 = arith.constant 0 : i32
    return %c0_i32, %c0_i32_0 : i32, i32
  }
  func.func @transform_4(%arg0: i32, %arg1: memref<3xf32, #tpu.memory_space<smem>>) -> (i32, i32) {
    %c0_i32 = arith.constant 0 : i32
    %c0_i32_0 = arith.constant 0 : i32
    %c0_i32_1 = arith.constant 0 : i32
    return %c0_i32, %c0_i32_0 : i32, i32
  }
  func.func @transform_5(%arg0: i32, %arg1: memref<3xf32, #tpu.memory_space<smem>>) -> (i32, i32) {
    %c0_i32 = arith.constant 0 : i32
    %c0_i32_0 = arith.constant 0 : i32
    return %arg0, %c0_i32 : i32, i32
  }
  func.func @transform_6(%arg0: i32, %arg1: memref<3xf32, #tpu.memory_space<smem>>) -> (i32, i32) {
    %c0_i32 = arith.constant 0 : i32
    %c0_i32_0 = arith.constant 0 : i32
    return %arg0, %c0_i32 : i32, i32
  }
}

</mosaic_0001>

<llo_original>
// kernel: tpu_custom_call.1
$region0: #{tpu_custom_call.1}
  #allocation0 [shape = 'u32[]', space=smem, size = 0x4, offset = 0x4, fixed_abs, tag = 'smem constant byte address 0x4 - core index']
  #allocation1 [shape = 'u32[144,128]{1,0:T(1,128)}', space=vmem, size = 0x12000, scoped, tag = 'internal scratch']
  #allocation2 [shape = 's32[1]{0}', space=sflag, size = 0x4, scoped, tag = 'scoped memory for tpu_custom_call.1']
  #allocation3 [shape = 'u8[512]{0}', space=smem, size = 0x200, scoped, tag = 'prefetched SMEM operand 0']
  %s0 = inlined_call_operand.hbm [shape: f32[3], index: 0, kind: input, shape index: {}]
  %s1 = inlined_call_operand.hbm [shape: f32[8,32], index: 1, kind: input, shape index: {}]
  %s2 = inlined_call_operand.hbm [shape: f32[3,8,32], index: 2, kind: input, shape index: {}]
  %s3 = inlined_call_operand.hbm [shape: bf16[32,128], index: 3, kind: input, shape index: {}]
  %s4 = inlined_call_operand.hbm [shape: f32[32,128], index: 4, kind: input, shape index: {}]
  %s5 = inlined_call_operand.vmem [shape: f32[1,128], index: 5, kind: input, shape index: {}]
  %s6 = inlined_call_operand.hbm [shape: f32[8,128], index: 6, kind: output, shape index: {0}]
  %s7 = inlined_call_operand.hbm [shape: f32[8,128], index: 7, kind: output, shape index: {1}]
  %8 = xla_tuple %s6, %s7
  %s9 = sld [smem:[#allocation0]]
  $region54: #{tpu_custom_call.1} parent=0
    _
  %s11 = ssub.s32 1, %s9
  %s12 = scalar_select 0, %s11, %s9
  %14 = dma.hbm_to_smem %s0, 16, [#allocation3], [#allocation2]
  %15 = dma.done [#allocation2], 16
  %16 = sfence
  $region1: #{tpu_custom_call.1} parent=0
    #allocation4 [shape = 'u8[4096]{0}', space=vmem, size = 0x1000, scoped, tag = 'input window, operand 1, single buffered']
    #allocation5 [shape = 's32[1]{0}', space=sflag, size = 0x4, scoped, tag = 'scoped memory for tpu_custom_call.1']
    #allocation6 [shape = 's32[1]{0}', space=sflag, size = 0x4, scoped, tag = 'scoped memory for tpu_custom_call.1']
    #allocation7 [shape = 'u8[12288]{0}', space=vmem, size = 0x3000, scoped, tag = 'input window, operand 2, single buffered']
    #allocation8 [shape = 's32[1]{0}', space=sflag, size = 0x4, scoped, tag = 'scoped memory for tpu_custom_call.1']
    #allocation9 [shape = 'u8[8192]{0}', space=vmem, size = 0x2000, scoped, tag = 'input window, operand 3, single buffered']
    #allocation10 [shape = 'u8[16384]{0}', space=vmem, size = 0x4000, scoped, tag = 'input window, operand 4, single buffered']
    #allocation11 [shape = 's32[1]{0}', space=sflag, size = 0x4, scoped, tag = 'scoped memory for tpu_custom_call.1']
    #allocation12 [shape = 'u8[4096]{0}', space=vmem, size = 0x1000, scoped, tag = 'output window, operand 0, single buffered']
    #allocation13 [shape = 'u8[4096]{0}', space=vmem, size = 0x1000, scoped, tag = 'output window, operand 1, single buffered']
    #allocation14 [shape = 's32[1]{0}', space=sflag, size = 0x4, scoped, tag = 'scoped memory for tpu_custom_call.1']
    %17 = vsyncpa [#allocation5], 0
    %18 = vsyncpa [#allocation8], 0
    %19 = vsyncpa [#allocation11], 0
    %20 = vsyncpa [#allocation6], 0
    %21 = vsyncpa [#allocation14], 0
    // Predicated region
    $region2: #{tpu_custom_call.1} parent=1 // pred_check
      _
    $region3: #{tpu_custom_call.1} parent=1 // pred_check_branch
      %23 = sbr.rel (0) target = $region5
    $region4: #{tpu_custom_call.1} parent=1 // pred_region
      %s25 = ssub.s32 128, 128
      %26 = vsyncadd [#allocation5], %s25
      %s28 = sshll.u32 [#allocation4], 4
      %s29 = int_to_ptr.vmem [resolvable:$true] %s28
      %31 = dma.hbm_to_vmem [thread:$0]  %s1, 128, %s29, [#allocation5]
    $region5: #{tpu_custom_call.1} parent=1 // pred_fallthru
      _
    // Predicated region
    $region6: #{tpu_custom_call.1} parent=1 // pred_check
      _
    $region7: #{tpu_custom_call.1} parent=1 // pred_check_branch
      %33 = sbr.rel (0) target = $region9
    $region8: #{tpu_custom_call.1} parent=1 // pred_region
      %s35 = ssub.s32 384, 384
      %36 = vsyncadd [#allocation8], %s35
      %s37 = sshll.u32 [#allocation7], 4
      %s38 = int_to_ptr.vmem [resolvable:$true] %s37
      %43 = dma.hbm_to_vmem [thread:$0]  %s2, 384, %s38, [#allocation8], 128, 128, 8
    $region9: #{tpu_custom_call.1} parent=1 // pred_fallthru
      _
    // Predicated region
    $region10: #{tpu_custom_call.1} parent=1 // pred_check
      _
    $region11: #{tpu_custom_call.1} parent=1 // pred_check_branch
      %45 = sbr.rel (0) target = $region13
    $region12: #{tpu_custom_call.1} parent=1 // pred_region
      %s47 = ssub.s32 256, 256
      %48 = vsyncadd [#allocation8], %s47
      %s49 = sshll.u32 [#allocation9], 4
      %s50 = int_to_ptr.vmem [resolvable:$true] %s49
      %55 = dma.hbm_to_vmem [thread:$0]  %s3, 256, %s50, [#allocation8], 64, 64, 4
    $region13: #{tpu_custom_call.1} parent=1 // pred_fallthru
      _
    // Predicated region
    $region14: #{tpu_custom_call.1} parent=1 // pred_check
      _
    $region15: #{tpu_custom_call.1} parent=1 // pred_check_branch
      %57 = sbr.rel (0) target = $region17
    $region16: #{tpu_custom_call.1} parent=1 // pred_region
      %s59 = ssub.s32 512, 512
      %60 = vsyncadd [#allocation11], %s59
      %s61 = sshll.u32 [#allocation10], 4
      %s62 = int_to_ptr.vmem [resolvable:$true] %s61
      %67 = dma.hbm_to_vmem [thread:$0]  %s4, 512, %s62, [#allocation11], 128, 128, 8
    $region17: #{tpu_custom_call.1} parent=1 // pred_fallthru
      _
    // Predicated region
    $region18: #{tpu_custom_call.1} parent=1 // pred_check
      _
    $region19: #{tpu_custom_call.1} parent=1 // pred_check_branch
      %69 = sbr.rel (0) target = $region21
    $region20: #{tpu_custom_call.1} parent=1 // pred_region
      _
    $region21: #{tpu_custom_call.1} parent=1 // pred_fallthru
      _
    // Predicated region
    $region22: #{tpu_custom_call.1} parent=1 // pred_check
      _
    $region23: #{tpu_custom_call.1} parent=1 // pred_check_branch
      %71 = sbr.rel (0) target = $region25
    $region24: #{tpu_custom_call.1} parent=1 // pred_region
      %72 = dma.done [#allocation5], 128
    $region25: #{tpu_custom_call.1} parent=1 // pred_fallthru
      _
    // Predicated region
    $region26: #{tpu_custom_call.1} parent=1 // pred_check
      _
    $region27: #{tpu_custom_call.1} parent=1 // pred_check_branch
      %74 = sbr.rel (0) target = $region29
    $region28: #{tpu_custom_call.1} parent=1 // pred_region
      %75 = dma.done [#allocation8], 384
    $region29: #{tpu_custom_call.1} parent=1 // pred_fallthru
      _
    // Predicated region
    $region30: #{tpu_custom_call.1} parent=1 // pred_check
      _
    $region31: #{tpu_custom_call.1} parent=1 // pred_check_branch
      %77 = sbr.rel (0) target = $region33
    $region32: #{tpu_custom_call.1} parent=1 // pred_region
      %78 = dma.done [#allocation8], 256
    $region33: #{tpu_custom_call.1} parent=1 // pred_fallthru
      _
    // Predicated region
    $region34: #{tpu_custom_call.1} parent=1 // pred_check
      _
    $region35: #{tpu_custom_call.1} parent=1 // pred_check_branch
      %80 = sbr.rel (0) target = $region37
    $region36: #{tpu_custom_call.1} parent=1 // pred_region
      %81 = dma.done [#allocation11], 512
    $region37: #{tpu_custom_call.1} parent=1 // pred_fallthru
      _
    %s83 = sld [smem:[#allocation3]]
    %s84 = sld [smem:[#allocation3 + $0x1]]
    %s85 = sld [smem:[#allocation3 + $0x2]]
    %v86 = vld [vmem:[#allocation4] sm:$0xff]
    %v87 = vld [vmem:[#allocation7] sm:$0xff]
    %v88 = vstv %s83
    %v89 = vmul.f32 %v88, %v87
    %v90 = vadd.f32 %v86, %v89
    %s91 = scalar_lea.vmem [#allocation7], 8
    %v92 = vld [vmem:[%s91] sm:$0xff]
    %v93 = vstv %s84
    %v94 = vmul.f32 %v93, %v92
    %v95 = vadd.f32 %v90, %v94
    %s96 = scalar_lea.vmem [#allocation7], 16
    %v97 = vld [vmem:[%s96] sm:$0xff]
    %v98 = vstv %s85
    %v99 = vmul.f32 %v98, %v97
    %v100 = vadd.f32 %v95, %v99
    %v101 = vpack.c.bf16 %v100, %v100
    %v102 = vld [vmem:[#allocation9] sm:$0xf]
    %v103 = vld [vmem:[#allocation9 + $0x4] sm:$0xf]
    %v104 = vld [vmem:[#allocation9 + $0x8] sm:$0xf]
    %v105 = vld [vmem:[#allocation9 + $0xc] sm:$0xf]
    %v110 = vunpack.c.l.b16 %v102
    %v111 = vunpack.c.l.b16 %v103
    %v112 = vunpack.c.l.b16 %v104
    %v113 = vunpack.c.l.b16 %v105
    %v114 = vpack.c.b16 %v111, %v110
    %v115 = vpack.c.b16 %v113, %v112
    %vm118 = vcmask 261120
    %v120 = vsel %vm118, %v101, 0
    %122 = vmatprep.subr.bf16.mxu0 0
    %123 = vmatpush1.bf16.msra.mxu0 0
    %124 = vmatprep.subr.bf16.mxu0 0
    %125 = vmatpush1.bf16.msra.mxu0 0
    %126 = vmatprep.subr.bf16.mxu0 0
    %127 = vmatpush1.bf16.msra.mxu0 0
    %128 = vmatprep.subr.bf16.mxu0 0
    %129 = vmatpush1.bf16.msra.mxu0 0
    %130 = vmatprep.subr.bf16.mxu0 0
    %131 = vmatpush1.bf16.msra.mxu0 0
    %132 = vmatprep.subr.bf16.mxu0 0
    %133 = vmatpush1.bf16.msra.mxu0 0
    %134 = vmatprep.subr.bf16.mxu0 0
    %135 = vmatpush1.bf16.msra.mxu0 %v115
    %136 = vmatprep.subr.bf16.mxu0 0
    %137 = vmatpush1.bf16.msra.mxu0 %v114
    %138 = vmatprep.subr.bf16.mxu0 0
    %139 = vmatpush2.bf16.msra.mxu0 0
    %140 = vmatprep.subr.bf16.mxu0 0
    %141 = vmatpush2.bf16.msra.mxu0 0
    %142 = vmatprep.subr.bf16.mxu0 0
    %143 = vmatpush2.bf16.msra.mxu0 0
    %144 = vmatprep.subr.bf16.mxu0 0
    %145 = vmatpush2.bf16.msra.mxu0 0
    %146 = vmatprep.subr.bf16.mxu0 0
    %147 = vmatpush2.bf16.msra.mxu0 0
    %148 = vmatprep.subr.bf16.mxu0 0
    %149 = vmatpush2.bf16.msra.mxu0 0
    %150 = vmatprep.subr.bf16.mxu0 0
    %151 = vmatpush2.bf16.msra.mxu0 0
    %152 = vmatprep.subr.bf16.mxu0 0
    %153 = vmatpush2.bf16.msra.mxu0 0
    %154 = vmatprep.mubr.bf16.mxu0 0
    %155 = vmatmul.mubr.bf16.gmra.mxu0 %v120
    %v156 = vpop.f32.mrf.mxu0
    %v157 = vadd.f32 0.0, %v156
    %v158 = vpop.f32.mrf.mxu0
    %v159 = vpop.f32.mrf.mxu0
    %v160 = vpop.f32.mrf.mxu0
    %161 = vdwg.mxu0
    %v162 = vmax.f32 %v157, 0.0
    %163 = vst [vmem:[#allocation12] sm:$0xff] %v162
    %v164 = vld [vmem:[#allocation10] sm:$0xff]
    %v165 = vld [vmem:[#allocation10 + $0x8] sm:$0xff]
    %v166 = vld [vmem:[#allocation10 + $0x10] sm:$0xff]
    %v167 = vld [vmem:[#allocation10 + $0x18] sm:$0xff]
    %v168 = vld [vmem:[%s5] sm:$0x1]
    %v170 = vlaneseq
    %v171 = vshrl.u32 %v170, 7
    %v172 = vsub.s32 0, %v171
    %v173 = vrot.slane %v168, %v172
    %v176 = vsel %vm118, %v86, 0
    %178 = vmatprep.subr.mxu0 0.0
    %179 = vmatpush1.msra.mxu0 0.0
    %180 = vmatprep.subr.mxu0 0.0
    %181 = vmatpush1.msra.mxu0 0.0
    %182 = vmatprep.subr.mxu0 0.0
    %183 = vmatpush1.msra.mxu0 0.0
    %184 = vmatprep.subr.mxu0 0.0
    %185 = vmatpush1.msra.mxu0 0.0
    %186 = vmatprep.subr.mxu0 0.0
    %187 = vmatpush1.msra.mxu0 0.0
    %188 = vmatprep.subr.mxu0 0.0
    %189 = vmatpush1.msra.mxu0 0.0
    %190 = vmatprep.subr.mxu0 0.0
    %191 = vmatpush1.msra.mxu0 0.0
    %192 = vmatprep.subr.mxu0 0.0
    %193 = vmatpush1.msra.mxu0 0.0
    %194 = vmatprep.subr.mxu0 0.0
    %195 = vmatpush1.msra.mxu0 0.0
    %196 = vmatprep.subr.mxu0 0.0
    %197 = vmatpush1.msra.mxu0 0.0
    %198 = vmatprep.subr.mxu0 0.0
    %199 = vmatpush1.msra.mxu0 0.0
    %200 = vmatprep.subr.mxu0 0.0
    %201 = vmatpush1.msra.mxu0 0.0
    %202 = vmatprep.subr.mxu0 0.0
    %203 = vmatpush1.msra.mxu0 %v167
    %204 = vmatprep.subr.mxu0 0.0
    %205 = vmatpush1.msra.mxu0 %v166
    %206 = vmatprep.subr.mxu0 0.0
    %207 = vmatpush1.msra.mxu0 %v165
    %208 = vmatprep.subr.mxu0 0.0
    %209 = vmatpush1.msra.mxu0 %v164
    %210 = vmatprep.subr.mxu0 0.0
    %211 = vmatpush2.msra.mxu0 0.0
    %212 = vmatprep.subr.mxu0 0.0
    %213 = vmatpush2.msra.mxu0 0.0
    %214 = vmatprep.subr.mxu0 0.0
    %215 = vmatpush2.msra.mxu0 0.0
    %216 = vmatprep.subr.mxu0 0.0
    %217 = vmatpush2.msra.mxu0 0.0
    %218 = vmatprep.subr.mxu0 0.0
    %219 = vmatpush2.msra.mxu0 0.0
    %220 = vmatprep.subr.mxu0 0.0
    %221 = vmatpush2.msra.mxu0 0.0
    %222 = vmatprep.subr.mxu0 0.0
    %223 = vmatpush2.msra.mxu0 0.0
    %224 = vmatprep.subr.mxu0 0.0
    %225 = vmatpush2.msra.mxu0 0.0
    %226 = vmatprep.subr.mxu0 0.0
    %227 = vmatpush2.msra.mxu0 0.0
    %228 = vmatprep.subr.mxu0 0.0
    %229 = vmatpush2.msra.mxu0 0.0
    %230 = vmatprep.subr.mxu0 0.0
    %231 = vmatpush2.msra.mxu0 0.0
    %232 = vmatprep.subr.mxu0 0.0
    %233 = vmatpush2.msra.mxu0 0.0
    %234 = vmatprep.subr.mxu0 0.0
    %235 = vmatpush2.msra.mxu0 0.0
    %236 = vmatprep.subr.mxu0 0.0
    %237 = vmatpush2.msra.mxu0 0.0
    %238 = vmatprep.subr.mxu0 0.0
    %239 = vmatpush2.msra.mxu0 0.0
    %240 = vmatprep.subr.mxu0 0.0
    %241 = vmatpush2.msra.mxu0 0.0
    %242 = vmatprep.mubr.f32.mxu0 0.0
    %243 = vmatmul.mubr.f32.gmra.mxu0 %v176
    %v244 = vpop.f32.mrf.mxu0
    %v245 = vadd.f32 %v173, %v244
    %v246 = vpop.f32.mrf.mxu0
    %247 = vdwg.mxu0
    %248 = vst [vmem:[#allocation13] sm:$0xff] %v245
    // Predicated region
    $region38: #{tpu_custom_call.1} parent=1 // pred_check
      _
    $region39: #{tpu_custom_call.1} parent=1 // pred_check_branch
      %250 = sbr.rel (0) target = $region41
    $region40: #{tpu_custom_call.1} parent=1 // pred_region
      %s252 = ssub.s32 128, 128
      %253 = vsyncadd [#allocation6], %s252
      %s255 = sshll.u32 [#allocation12], 4
      %s256 = int_to_ptr.vmem [resolvable:$true] %s255
      %258 = dma.vmem_to_hbm [thread:$0]  %s256, 128, %s6, [#allocation6]
    $region41: #{tpu_custom_call.1} parent=1 // pred_fallthru
      _
    // Predicated region
    $region42: #{tpu_custom_call.1} parent=1 // pred_check
      _
    $region43: #{tpu_custom_call.1} parent=1 // pred_check_branch
      %260 = sbr.rel (0) target = $region45
    $region44: #{tpu_custom_call.1} parent=1 // pred_region
      %s262 = ssub.s32 128, 128
      %263 = vsyncadd [#allocation14], %s262
      %s265 = sshll.u32 [#allocation13], 4
      %s266 = int_to_ptr.vmem [resolvable:$true] %s265
      %268 = dma.vmem_to_hbm [thread:$0]  %s266, 128, %s7, [#allocation14]
    $region45: #{tpu_custom_call.1} parent=1 // pred_fallthru
      _
    // Predicated region
    $region46: #{tpu_custom_call.1} parent=1 // pred_check
      _
    $region47: #{tpu_custom_call.1} parent=1 // pred_check_branch
      %270 = sbr.rel (0) target = $region49
    $region48: #{tpu_custom_call.1} parent=1 // pred_region
      %271 = dma.done [#allocation6], 128
    $region49: #{tpu_custom_call.1} parent=1 // pred_fallthru
      _
    // Predicated region
    $region50: #{tpu_custom_call.1} parent=1 // pred_check
      _
    $region51: #{tpu_custom_call.1} parent=1 // pred_check_branch
      %273 = sbr.rel (0) target = $region53
    $region52: #{tpu_custom_call.1} parent=1 // pred_region
      %274 = dma.done [#allocation14], 128
    $region53: #{tpu_custom_call.1} parent=1 // pred_fallthru
      _
    %275 = vsyncpa [#allocation5], 1
    %276 = vsyncpa [#allocation8], 1
    %277 = vsyncpa [#allocation11], 1
    %278 = vsyncpa [#allocation6], 1
    %279 = vsyncpa [#allocation14], 1

</llo_original>
